<compile_context>
chip_gen: v5e
topology: v5e:2x2
jax: 0.10.0
libtpu: 0.0.40
codegen_flags: <defaults>
</compile_context>

<pallas_src>
from functools import partial

import jax
import jax.numpy as jnp
from jax.experimental import pallas as pl
from jax.experimental.pallas import tpu as pltpu


# ---------------------------------------------------------------------------
# Kernels
# ---------------------------------------------------------------------------

def _pool_divisible_kernel(x_ref, o_ref, *, kh, kw, wout):
    """Adaptive max pool (divisible case) on one (bt, ct, h_blk, W) block.

    h_blk = rb*kh covers `rb` complete row bins; the output block is
    (bt, rb*wout, ct), i.e. channel-minor (lane-dense) token rows.
    """
    bt, ct, h_blk, W = x_ref.shape
    rb = h_blk // kh

    # Stage 1: row-bin maxima via contiguous sublane slices of the ref
    # (no full-block reshape / relayout, no full-value load).
    rows = [
        jnp.max(x_ref[:, :, i * kh:(i + 1) * kh, :], axis=2, keepdims=True)
        for i in range(rb)
    ]                                                            # (bt, ct, 1, W) each
    rowmax = rows[0] if rb == 1 else jnp.concatenate(rows, axis=2)   # (bt, ct, rb, W)

    # Stage 2: column-bin maxima on the kh-times-smaller rowmax slab.
    cols = [
        jnp.max(rowmax[:, :, :, j * kw:(j + 1) * kw], axis=3, keepdims=True)
        for j in range(wout)
    ]                                                            # (bt, ct, rb, 1) each
    pooled = cols[0] if wout == 1 else jnp.concatenate(cols, axis=3)  # (bt, ct, rb, wout)

    # Only the tiny pooled slab is transposed to channel-minor; store is lane-dense in ct.
    out = jnp.swapaxes(pooled.reshape(bt, ct, rb * wout), 1, 2)       # (bt, rb*wout, ct)
    o_ref[...] = out.astype(o_ref.dtype)


def _pool_ragged_kernel(x_ref, o_ref, *, wout):
    """Adaptive max pool with PyTorch ragged bins: start=floor(i*H/w), end=ceil((i+1)*H/w).

    Same two-stage structure as the divisible path (row bins -> column bins ->
    one tiny transpose) instead of wout^2 full 2-D reductions + masked stores.
    """
    bt, ct, H, W = x_ref.shape
    ns = wout * wout

    rows = []
    for i in range(wout):
        hs = (i * H) // wout
        he = ((i + 1) * H + wout - 1) // wout
        rows.append(jnp.max(x_ref[:, :, hs:he, :], axis=2, keepdims=True))
    rowmax = rows[0] if wout == 1 else jnp.concatenate(rows, axis=2)   # (bt, ct, wout, W)

    cols = []
    for j in range(wout):
        ws = (j * W) // wout
        we = ((j + 1) * W + wout - 1) // wout
        cols.append(jnp.max(rowmax[:, :, :, ws:we], axis=3, keepdims=True))
    pooled = cols[0] if wout == 1 else jnp.concatenate(cols, axis=3)   # (bt, ct, wout, wout)

    out = jnp.swapaxes(pooled.reshape(bt, ct, ns), 1, 2)               # (bt, ns, ct)
    o_ref[...] = out.astype(o_ref.dtype)


# ---------------------------------------------------------------------------
# Host-side tiling / sizing helpers (padding-aware)
# ---------------------------------------------------------------------------

def _round_up(x, m):
    return ((x + m - 1) // m) * m


def _sublane_tile(dtype):
    # f32 -> 8, bf16/f16 -> 16, int8/fp8 -> 32
    return max(8, 32 // jnp.dtype(dtype).itemsize)


def _padded_plane_bytes(h, w, dtype):
    """VMEM bytes of one (h, w) spatial plane after (sublane, 128) tiling/padding."""
    st = _sublane_tile(dtype)
    return _round_up(max(h, 1), st) * _round_up(max(w, 1), 128) * jnp.dtype(dtype).itemsize


def _tpu_vmem_and_cores():
    cap = 0
    cores = 0
    try:
        info = pltpu.get_tpu_info()
        try:
            cap = int(getattr(info, "vmem_capacity_bytes", 0) or 0)
        except (TypeError, ValueError):
            cap = 0
        for attr in ("num_cores", "core_count", "num_tensorcores", "tensorcore_count"):
            v = getattr(info, attr, None)
            try:
                v = int(v)
            except (TypeError, ValueError):
                v = 0
            if v > 0:
                cores = v
                break
    except Exception:
        pass
    if cap <= 0:
        cap = 64 * 1024 * 1024          # conservative (v7x per-TC VMEM)
    if cores <= 0:
        cores = 2 if cap <= 96 * 1024 * 1024 else 1   # v7x heuristic
    return cap, max(1, min(2, cores))


def _choose_channel_tile(C, plane_bytes, budget):
    """Output block is (.., ct): ct must be a multiple of 128 unless ct == C."""
    if C * plane_bytes <= budget:
        return C
    mults = [d for d in range(128, C, 128) if C % d == 0]
    if not mults:
        return C
    fitting = [d for d in mults if d * plane_bytes <= budget]
    return max(fitting) if fitting else min(mults)


def _choose_row_bin_tile(wout, kh, W, ct, dtype, budget):
    """Row bins per block (divisible path). h_blk = rb*kh; rb must divide wout and keep
    both the input (h_blk) and output (rb*wout) sublane dims tile-aligned unless full."""
    if ct * _padded_plane_bytes(wout * kh, W, dtype) <= budget:
        return wout
    st = _sublane_tile(dtype)
    cands = [d for d in range(1, wout)
             if wout % d == 0 and (d * kh) % st == 0 and (d * wout) % st == 0]
    fitting = [d for d in cands if ct * _padded_plane_bytes(d * kh, W, dtype) <= budget]
    if fitting:
        return max(fitting)
    if cands:
        return min(cands)
    return wout


def _choose_batch_tile(B, per_batch_bytes, budget, other_steps, min_steps):
    """Largest bt fitting the budget, preferring >= min_steps total grid steps
    (so multi-TensorCore parts get parallel work); falls back to largest fitting bt."""
    best_fit = 1
    best_with_steps = None
    for d in range(1, B + 1):
        if B % d:
            continue
        if d * per_batch_bytes <= budget:
            best_fit = d
            if (B // d) * other_steps >= min_steps:
                best_with_steps = d
    return best_with_steps if best_with_steps is not None else best_fit


# ---------------------------------------------------------------------------
# Public wrapper
# ---------------------------------------------------------------------------

def multi_scale_semantic_token1(x, sample_window_size, *, input_block_budget_bytes=None):
    """x: (B, C, H, W)  ->  (B, sample_window_size**2, C)."""
    B, C, H, W = x.shape
    wout = int(sample_window_size)
    ns = wout * wout
    dtype = x.dtype
    itemsize = jnp.dtype(dtype).itemsize
    st = _sublane_tile(dtype)

    # Chip-aware budgets (padded bytes per input block; Pallas double-buffers it).
    cap, cores = _tpu_vmem_and_cores()
    if cap >= 100 * 1024 * 1024:        # v5e / v6e: 128 MiB VMEM
        budget = 28 * 1024 * 1024
        vmem_limit = 100 * 1024 * 1024
    else:                               # v7x: 64 MiB VMEM per TensorCore
        budget = 12 * 1024 * 1024
        vmem_limit = 56 * 1024 * 1024
    if input_block_budget_bytes is not None:
        budget = int(input_block_budget_bytes)

    plane_bytes_full = _padded_plane_bytes(H, W, dtype)
    ct = _choose_channel_tile(C, plane_bytes_full, budget)

    divisible = (H % wout == 0) and (W % wout == 0)
    if divisible:
        kh, kw = H // wout, W // wout
        rb = _choose_row_bin_tile(wout, kh, W, ct, dtype, budget)   # row bins per block
        h_blk = rb * kh
        n_h = wout // rb
    else:
        rb, h_blk, n_h = wout, H, 1

    plane_bytes_blk = _padded_plane_bytes(h_blk, W, dtype)
    per_batch_bytes = ct * plane_bytes_blk
    other_steps = (C // ct) * n_h
    bt = _choose_batch_tile(B, per_batch_bytes, budget, other_steps, min_steps=cores)

    # VMEM limit: at least the chip base, at most capacity minus headroom, and always
    # enough for the double-buffered blocks actually chosen (best-effort cases).
    in_block_bytes = bt * per_batch_bytes
    out_block_bytes = bt * _round_up(rb * wout, st) * _round_up(ct, 128) * itemsize
    needed = 2 * (in_block_bytes + out_block_bytes) + in_block_bytes // 4 + (2 << 20)
    vmem_limit = min(max(vmem_limit, needed), cap - 8 * 1024 * 1024)
    vmem_limit = max(vmem_limit, 32 * 1024 * 1024)

    cost = pl.CostEstimate(
        flops=B * C * H * W,
        transcendentals=0,
        bytes_accessed=B * C * plane_bytes_full + B * ns * C * itemsize,
    )

    if divisible:
        kernel = partial(_pool_divisible_kernel, kh=kh, kw=kw, wout=wout)
        grid = (B // bt, C // ct, n_h)
        in_specs = [pl.BlockSpec((bt, ct, h_blk, W), lambda b, c, h: (b, c, h, 0))]
        out_specs = pl.BlockSpec((bt, rb * wout, ct), lambda b, c, h: (b, h, c))
        dims = ("parallel", "parallel", "parallel")
    else:
        kernel = partial(_pool_ragged_kernel, wout=wout)
        grid = (B // bt, C // ct)
        in_specs = [pl.BlockSpec((bt, ct, H, W), lambda b, c: (b, c, 0, 0))]
        out_specs = pl.BlockSpec((bt, ns, ct), lambda b, c: (b, 0, c))
        dims = ("parallel", "parallel")

    return pl.pallas_call(
        kernel,
        out_shape=jax.ShapeDtypeStruct((B, ns, C), dtype),
        grid=grid,
        in_specs=in_specs,
        out_specs=out_specs,
        compiler_params=pltpu.CompilerParams(
            dimension_semantics=dims,
            vmem_limit_bytes=int(vmem_limit),
        ),
        cost_estimate=cost,
    )(x)


# ---------------------------------------------------------------------------
# Pure-JAX reference + self-test
# ---------------------------------------------------------------------------

def _reference(x, wout):
    # F.adaptive_max_pool2d(x, (w, w)).view(B, C, w*w).transpose(2, 1)
    B, C, H, W = x.shape
    outs = []
    for i in range(wout):
        hs, he = (i * H) // wout, ((i + 1) * H + wout - 1) // wout
        for j in range(wout):
            ws, we = (j * W) // wout, ((j + 1) * W + wout - 1) // wout
            outs.append(jnp.max(x[:, :, hs:he, ws:we], axis=(2, 3)))  # (B, C)
    return jnp.stack(outs, axis=1)  # (B, w*w, C)


if __name__ == "__main__":
    key = jax.random.PRNGKey(0)
    B, C, H, W = 2, 4, 16, 16
    x = jax.random.normal(key, (B, C, H, W), dtype=jnp.float32)

    # Divisible fast path (H % w == 0).
    w_div = 4
    out = jax.block_until_ready(multi_scale_semantic_token1(x, w_div))
    ref = _reference(x, w_div)
    assert out.shape == (B, w_div * w_div, C), out.shape
    assert jnp.allclose(out, ref), "mismatch vs reference (divisible path)"

    # Ragged fallback path (H % w != 0), same PyTorch bin boundaries.
    w_rag = 3
    out_r = jax.block_until_ready(multi_scale_semantic_token1(x, w_rag))
    ref_r = _reference(x, w_rag)
    assert out_r.shape == (B, w_rag * w_rag, C), out_r.shape
    assert jnp.allclose(out_r, ref_r), "mismatch vs reference (ragged path)"

    # Channel + row-bin (H) tiling path, exercised by forcing a tiny block budget.
    x2 = jax.random.normal(jax.random.PRNGKey(0), (2, 256, 16, 16), dtype=jnp.float32)
    out_t = jax.block_until_ready(
        multi_scale_semantic_token1(x2, 4, input_block_budget_bytes=300 * 1024))
    ref_t = _reference(x2, 4)
    assert out_t.shape == (2, 16, 256), out_t.shape
    assert jnp.allclose(out_t, ref_t), "mismatch vs reference (tiled path)"

    print("KERNEL_OK")
</pallas_src>

<mosaic_0001>
module attributes {stable_mosaic.version = 11 : i64} {
  func.func @_pool_divisible_kernel(%arg0: i32, %arg1: i32, %arg2: i32, %arg3: memref<1x4x16x16xf32, #tpu.memory_space<vmem>>, %arg4: memref<1x16x4xf32, #tpu.memory_space<vmem>>) attributes {dimension_semantics = [#tpu.dimension_semantics<parallel>, #tpu.dimension_semantics<parallel>, #tpu.dimension_semantics<parallel>], iteration_bounds = array<i64: 2, 1, 1>, scalar_prefetch = 0 : i64, scratch_operands = 0 : i64, tpu.core_type = #tpu.core_type<tc>, window_params = [{transform_indices = @transform_0, window_bounds = array<i64: 1, 4, 16, 16>}, {transform_indices = @transform_1, window_bounds = array<i64: 1, 16, 4>}]} {
    %c0 = arith.constant 0 : index
    %c0_0 = arith.constant 0 : index
    %c0_1 = arith.constant 0 : index
    %c0_2 = arith.constant 0 : index
    %0 = vector.load %arg3[%c0, %c0_0, %c0_1, %c0_2] : memref<1x4x16x16xf32, #tpu.memory_space<vmem>>, vector<1x4x4x16xf32>
    %cst = arith.constant dense<0xFF800000> : vector<1x4x16xf32>
    %1 = vector.multi_reduction <maximumf>, %0, %cst [2] : vector<1x4x4x16xf32> to vector<1x4x16xf32>
    %2 = vector.shape_cast %1 : vector<1x4x16xf32> to vector<1x4x1x16xf32>
    %c0_3 = arith.constant 0 : index
    %c0_4 = arith.constant 0 : index
    %c4 = arith.constant 4 : index
    %c0_5 = arith.constant 0 : index
    %3 = vector.load %arg3[%c0_3, %c0_4, %c4, %c0_5] : memref<1x4x16x16xf32, #tpu.memory_space<vmem>>, vector<1x4x4x16xf32>
    %cst_6 = arith.constant dense<0xFF800000> : vector<1x4x16xf32>
    %4 = vector.multi_reduction <maximumf>, %3, %cst_6 [2] : vector<1x4x4x16xf32> to vector<1x4x16xf32>
    %5 = vector.shape_cast %4 : vector<1x4x16xf32> to vector<1x4x1x16xf32>
    %c0_7 = arith.constant 0 : index
    %c0_8 = arith.constant 0 : index
    %c8 = arith.constant 8 : index
    %c0_9 = arith.constant 0 : index
    %6 = vector.load %arg3[%c0_7, %c0_8, %c8, %c0_9] : memref<1x4x16x16xf32, #tpu.memory_space<vmem>>, vector<1x4x4x16xf32>
    %cst_10 = arith.constant dense<0xFF800000> : vector<1x4x16xf32>
    %7 = vector.multi_reduction <maximumf>, %6, %cst_10 [2] : vector<1x4x4x16xf32> to vector<1x4x16xf32>
    %8 = vector.shape_cast %7 : vector<1x4x16xf32> to vector<1x4x1x16xf32>
    %c0_11 = arith.constant 0 : index
    %c0_12 = arith.constant 0 : index
    %c12 = arith.constant 12 : index
    %c0_13 = arith.constant 0 : index
    %9 = vector.load %arg3[%c0_11, %c0_12, %c12, %c0_13] : memref<1x4x16x16xf32, #tpu.memory_space<vmem>>, vector<1x4x4x16xf32>
    %cst_14 = arith.constant dense<0xFF800000> : vector<1x4x16xf32>
    %10 = vector.multi_reduction <maximumf>, %9, %cst_14 [2] : vector<1x4x4x16xf32> to vector<1x4x16xf32>
    %11 = vector.shape_cast %10 : vector<1x4x16xf32> to vector<1x4x1x16xf32>
    %12 = tpu.concatenate %2, %5, %8, %11 in 2 : vector<1x4x1x16xf32>, vector<1x4x1x16xf32>, vector<1x4x1x16xf32>, vector<1x4x1x16xf32> -> vector<1x4x4x16xf32>
    %13 = vector.extract_strided_slice %12 {offsets = [0, 0, 0, 0], sizes = [1, 4, 4, 4], strides = [1, 1, 1, 1]} : vector<1x4x4x16xf32> to vector<1x4x4x4xf32>
    %cst_15 = arith.constant dense<0xFF800000> : vector<1x4x4xf32>
    %14 = vector.multi_reduction <maximumf>, %13, %cst_15 [3] : vector<1x4x4x4xf32> to vector<1x4x4xf32>
    %15 = vector.shape_cast %14 : vector<1x4x4xf32> to vector<1x4x4x1xf32>
    %16 = vector.extract_strided_slice %12 {offsets = [0, 0, 0, 4], sizes = [1, 4, 4, 4], strides = [1, 1, 1, 1]} : vector<1x4x4x16xf32> to vector<1x4x4x4xf32>
    %cst_16 = arith.constant dense<0xFF800000> : vector<1x4x4xf32>
    %17 = vector.multi_reduction <maximumf>, %16, %cst_16 [3] : vector<1x4x4x4xf32> to vector<1x4x4xf32>
    %18 = vector.shape_cast %17 : vector<1x4x4xf32> to vector<1x4x4x1xf32>
    %19 = vector.extract_strided_slice %12 {offsets = [0, 0, 0, 8], sizes = [1, 4, 4, 4], strides = [1, 1, 1, 1]} : vector<1x4x4x16xf32> to vector<1x4x4x4xf32>
    %cst_17 = arith.constant dense<0xFF800000> : vector<1x4x4xf32>
    %20 = vector.multi_reduction <maximumf>, %19, %cst_17 [3] : vector<1x4x4x4xf32> to vector<1x4x4xf32>
    %21 = vector.shape_cast %20 : vector<1x4x4xf32> to vector<1x4x4x1xf32>
    %22 = vector.extract_strided_slice %12 {offsets = [0, 0, 0, 12], sizes = [1, 4, 4, 4], strides = [1, 1, 1, 1]} : vector<1x4x4x16xf32> to vector<1x4x4x4xf32>
    %cst_18 = arith.constant dense<0xFF800000> : vector<1x4x4xf32>
    %23 = vector.multi_reduction <maximumf>, %22, %cst_18 [3] : vector<1x4x4x4xf32> to vector<1x4x4xf32>
    %24 = vector.shape_cast %23 : vector<1x4x4xf32> to vector<1x4x4x1xf32>
    %25 = tpu.concatenate %15, %18, %21, %24 in 3 : vector<1x4x4x1xf32>, vector<1x4x4x1xf32>, vector<1x4x4x1xf32>, vector<1x4x4x1xf32> -> vector<1x4x4x4xf32>
    %26 = vector.shape_cast %25 : vector<1x4x4x4xf32> to vector<1x4x16xf32>
    %27 = tpu.transpose %26, [0, 2, 1] : vector<1x4x16xf32> -> vector<1x16x4xf32>
    %c0_19 = arith.constant 0 : index
    %c0_20 = arith.constant 0 : index
    %c0_21 = arith.constant 0 : index
    %28 = vector.load %arg4[%c0_19, %c0_20, %c0_21] : memref<1x16x4xf32, #tpu.memory_space<vmem>>, vector<1x16x4xf32>
    tpu.vector_store %arg4[%c0_19, %c0_20, %c0_21], %27 {strides = array<i32>} : memref<1x16x4xf32, #tpu.memory_space<vmem>>, vector<1x16x4xf32>,
    return
  }
  func.func @transform_0(%arg0: i32, %arg1: i32, %arg2: i32) -> (i32, i32, i32, i32) {
    %c0_i32 = arith.constant 0 : i32
    %c0_i32_0 = arith.constant 0 : i32
    return %arg0, %arg1, %arg2, %c0_i32 : i32, i32, i32, i32
  }
  func.func @transform_1(%arg0: i32, %arg1: i32, %arg2: i32) -> (i32, i32, i32) {
    %c0_i32 = arith.constant 0 : i32
    return %arg0, %arg2, %arg1 : i32, i32, i32
  }
}

</mosaic_0001>

<llo_original>
// kernel: tpu_custom_call.1
$region0: #{tpu_custom_call.1}
  #allocation0 [shape = 'u32[]', space=smem, size = 0x4, offset = 0x4, fixed_abs, tag = 'smem constant byte address 0x4 - core index']
  #allocation1 [shape = 'u32[72,128]{1,0:T(1,128)}', space=vmem, size = 0x9000, scoped, tag = 'internal scratch']
  %s0 = inlined_call_operand.hbm [shape: f32[2,4,16,16], index: 0, kind: input, shape index: {}]
  %s1 = inlined_call_operand.vmem [shape: f32[2,16,4], index: 1, kind: output, shape index: {}]
  %s2 = sld [smem:[#allocation0]]
  $region41: #{tpu_custom_call.1} parent=0
    _
  %s4 = ssub.s32 1, %s2
  %s5 = scalar_select 0, %s4, %s2
  $region1: #{tpu_custom_call.1} parent=0
    #allocation2 [shape = 'u8[65536]{0}', space=vmem, size = 0x10000, scoped, tag = 'input window, operand 0']
    #allocation3 [shape = 's32[2]{0}', space=sflag, size = 0x8, scoped, tag = 'scoped memory for tpu_custom_call.1']
    %6 = vsyncpa [#allocation3], 0
    %s7 = scalar_lea.sflag [#allocation3], 1
    %8 = vsyncpa %s7, 0
    loop: start=0, step=1, limit=4
    $region2: #{tpu_custom_call.1} parent=1 // loop_pre_header
      _
    $region3: #{tpu_custom_call.1} parent=1 // loop_header
      %s10 = sphi 0, %s14
      %p11 = scmp.ge.s32.totalorder %s10, 4
      %s17 = sphi 0, %s36
      %s18 = sphi 0, %s32
      %s19 = sphi 0, %s28
      %s20 = sphi 0, %s17
      %s21 = sphi 0, %s18
      %s22 = sphi 0, %s19
      %s23 = sphi 0, %s20
      %s24 = sphi 0, %s21
      %s25 = sphi 0, %s22
      %s43 = sphi 0, %s45
      %s46 = sphi 0, %s43
      %s47 = sphi 0, %s46
      %s63 = sphi 0, %s47
      %s73 = sphi 0, %s75
      %s76 = sphi 0, %s73
      %s77 = sphi 0, %s76
      %s93 = sphi 0, %s77
    $region4: #{tpu_custom_call.1} parent=1 // loop_header_branch
      %13 = sbr.rel (%p11) target = $region8
    $region5: #{tpu_custom_call.1} parent=1 // loop_body
      %s15 = ssub.s32 %s10, 1
      %s16 = ssub.s32 %s10, 2
      %s26 = sadd.s32 1, %s19
      %p27 = scmp.ge.s32.totalorder %s26, 1
      %s28 = scalar_select %p27, 0, %s26
      %s29 = sadd.s32 1, %s18
      %s30 = scalar_select %p27, %s29, %s18
      %p31 = scmp.ge.s32.totalorder %s30, 1
      %s32 = scalar_select %p31, 0, %s30
      %s33 = sadd.s32 1, %s17
      %s34 = scalar_select %p31, %s33, %s17
      %p35 = scmp.ge.s32.totalorder %s34, 2
      %s36 = scalar_select %p35, 0, %s34
      %s37 = ssub.s32 %s17, %s36
      %s38 = ssub.s32 %s18, %s32
      %s39 = sor.u32 %s37, %s38
      %s40 = ssub.s32 %s19, %s28
      %s41 = sor.u32 %s39, %s40
      %p42 = scmp.eq.s32.totalorder %s41, 0
      %s44 = sadd.s32 %s43, 1
      %s45 = scalar_select %p42, %s43, %s44
      %p48 = pneg %p42
      %p49 = scmp.eq.s32.totalorder %s10, 1
      %p50 = por %p48, %p49
      %p51 = scmp.ne.s32.totalorder %s43, %s46
      %p52 = scmp.eq.s32.totalorder %s10, 0
      %p53 = por %p51, %p52
      %p54 = scmp.ne.s32.totalorder %s43, %s46
      %p55 = scmp.eq.s32.totalorder %s15, 1
      %p56 = por %p54, %p55
      %p57 = scmp.ne.s32.totalorder %s46, %s47
      %p58 = scmp.eq.s32.totalorder %s15, 0
      %p59 = por %p57, %p58
      %p60 = scmp.ne.s32.totalorder %s46, %s47
      %p61 = scmp.eq.s32.totalorder %s16, 1
      %p62 = por %p60, %p61
      %p64 = scmp.ne.s32.totalorder %s47, %s63
      %p65 = scmp.eq.s32.totalorder %s16, 0
      %p66 = por %p64, %p65
      %s67 = ssub.s32 %s17, %s36
      %s68 = ssub.s32 %s19, %s28
      %s69 = sor.u32 %s67, %s68
      %s70 = ssub.s32 %s18, %s32
      %s71 = sor.u32 %s69, %s70
      %p72 = scmp.eq.s32.totalorder %s71, 0
      %s74 = sadd.s32 %s73, 1
      %s75 = scalar_select %p72, %s73, %s74
      %p78 = pneg %p72
      %p79 = scmp.eq.s32.totalorder %s10, 1
      %p80 = por %p78, %p79
      %p81 = scmp.ne.s32.totalorder %s73, %s76
      %p82 = scmp.eq.s32.totalorder %s10, 0
      %p83 = por %p81, %p82
      %p84 = scmp.ne.s32.totalorder %s73, %s76
      %p85 = scmp.eq.s32.totalorder %s15, 1
      %p86 = por %p84, %p85
      %p87 = scmp.ne.s32.totalorder %s76, %s77
      %p88 = scmp.eq.s32.totalorder %s15, 0
      %p89 = por %p87, %p88
      %p90 = scmp.ne.s32.totalorder %s76, %s77
      %p91 = scmp.eq.s32.totalorder %s16, 1
      %p92 = por %p90, %p91
      %p94 = scmp.ne.s32.totalorder %s77, %s93
      %p95 = scmp.eq.s32.totalorder %s16, 0
      %p96 = por %p94, %p95
      %p97 = scmp.le.s32.totalorder 1, %s10
      %p98 = scmp.lt.s32.totalorder %s10, 3
      %p99 = pnand %p97, %p98
      %p100 = pneg %p99
      // Predicated region
      $region9: #{tpu_custom_call.1} parent=5 // pred_check
        _
      $region10: #{tpu_custom_call.1} parent=5 // pred_check_branch
        %102 = sbr.rel (%p99) target = $region12
      $region11: #{tpu_custom_call.1} parent=5 // pred_region
        %s103 = ssub.s32 %s10, 1
      $region12: #{tpu_custom_call.1} parent=5 // pred_fallthru
        _
      %p104 = scmp.lt.s32.totalorder %s10, 2
      // Predicated region
      $region13: #{tpu_custom_call.1} parent=5 // pred_check
        %p105 = pneg %p104
      $region14: #{tpu_custom_call.1} parent=5 // pred_check_branch
        %107 = sbr.rel (%p105) target = $region16
      $region15: #{tpu_custom_call.1} parent=5 // pred_region
        // Predicated region
        $region17: #{tpu_custom_call.1} parent=15 // pred_check
          %p108 = pneg %p53
        $region18: #{tpu_custom_call.1} parent=15 // pred_check_branch
          %110 = sbr.rel (%p108) target = $region20
        $region19: #{tpu_custom_call.1} parent=15 // pred_region
          %s111 = sand.u32 %s43, 1
          %s112 = scalar_lea.sflag [#allocation3], %s111
          %s113 = sand.u32 %s43, 1
          %s114 = smul.addr %s113, 64
          %s115 = scalar_lea.vmem [#allocation2], %s114
          %s116 = smul.u32 4, %s18
          %s117 = smul.u32 2, %s19
          %119 = vsyncadd %s112, 0
          %s120 = smul.addr %s116, 2
          %s121 = sadd.s32 %s117, %s120
          %s122 = smul.addr %s17, 8
          %s123 = sadd.s32 %s121, %s122
          %s124 = smul.addr %s123, 8
          %s125 = scalar_lea.hbm %s0, %s124
          %s126 = sshll.u32 %s125, 4
          %s127 = int_to_ptr.hbm [resolvable:$true] %s126
          %s128 = sshll.u32 %s115, 4
          %s129 = int_to_ptr.vmem [resolvable:$true] %s128
          %134 = dma.hbm_to_vmem [thread:$0]  %s127, 1024, %s129, %s112, 128, 128, 8
        $region20: #{tpu_custom_call.1} parent=15 // pred_fallthru
          _
      $region16: #{tpu_custom_call.1} parent=5 // pred_fallthru
        _
      %p135 = scmp.le.s32.totalorder 1, %s10
      %p136 = scmp.lt.s32.totalorder %s10, 3
      %p137 = pnand %p135, %p136
      %p138 = pneg %p137
      // Predicated region
      $region21: #{tpu_custom_call.1} parent=5 // pred_check
        _
      $region22: #{tpu_custom_call.1} parent=5 // pred_check_branch
        %140 = sbr.rel (%p137) target = $region24
      $region23: #{tpu_custom_call.1} parent=5 // pred_region
        %s141 = ssub.s32 %s10, 1
        %s142 = sand.u32 %s46, 1
        %s143 = scalar_lea.sflag [#allocation3], %s142
        %s144 = sand.u32 %s46, 1
        %s145 = smul.addr %s144, 64
        %s146 = scalar_lea.vmem [#allocation2], %s145
        // Predicated region
        $region25: #{tpu_custom_call.1} parent=23 // pred_check
          %p147 = pneg %p59
        $region26: #{tpu_custom_call.1} parent=23 // pred_check_branch
          %149 = sbr.rel (%p147) target = $region28
        $region27: #{tpu_custom_call.1} parent=23 // pred_region
          %151 = dma.done %s143, 1024
        $region28: #{tpu_custom_call.1} parent=23 // pred_fallthru
          _
        %s152 = sand.u32 %s46, 1
        %s153 = scalar_lea.sflag [#allocation3], %s152
        %s154 = sand.u32 %s46, 1
        %s155 = smul.addr %s154, 64
        %s156 = scalar_lea.vmem [#allocation2], %s155
        %p157 = pneg %p59
        %p158 = pneg %p56
        %p159 = pneg %p89
        %p160 = pneg %p86
        %s161 = smul.u32 2, %s22
        %p162 = scmp.lt.s32.totalorder %s20, 1
        %s163 = scalar_select %p162, %s20, 1
        %p164 = scmp.lt.s32.totalorder %s161, 1
        %s165 = scalar_select %p164, %s161, 1
        %p166 = scmp.lt.s32.totalorder %s21, 0
        %s167 = scalar_select %p166, %s21, 0
        %s168 = sadd.s32 %s167, %s165
        %s169 = smul.addr %s163, 2
        %s170 = sadd.s32 %s168, %s169
        %s171 = smul.addr %s170, 8
        %s172 = scalar_lea.vmem %s1, %s171
        %s173 = smul.u32 4, %s21
        %s174 = smul.u32 2, %s22
        %s175 = smul.u32 2, %s22
        %p176 = scmp.lt.s32.totalorder %s20, 1
        %s177 = scalar_select %p176, %s20, 1
        %p178 = scmp.lt.s32.totalorder %s175, 1
        %s179 = scalar_select %p178, %s175, 1
        %p180 = scmp.lt.s32.totalorder %s21, 0
        %s181 = scalar_select %p180, %s21, 0
        %s182 = sadd.s32 %s181, %s179
        %s183 = smul.addr %s177, 2
        %s184 = sadd.s32 %s182, %s183
        %s185 = smul.addr %s184, 8
        %s186 = scalar_lea.vmem %s1, %s185
        %s187 = smul.u32 2, %s22
        %v188 = vld [vmem:[%s146] sm:$0xf]
        %v189 = vld [vmem:[%s146 + $0x10] sm:$0xf]
        %v190 = vld [vmem:[%s146 + $0x20] sm:$0xf]
        %v191 = vld [vmem:[%s146 + $0x30] sm:$0xf]
        %vm192 = vcmask 125952
        %v193 = vsel %vm192, %v188, -inf
        %v194 = vrot.slane %v193, 4
        %v195 = vmax.f32 %v193, %v194
        %v196 = vrot.slane %v195, 2
        %v197 = vmax.f32 %v195, %v196
        %v198 = vrot.slane %v197, 1
        %v199 = vmax.f32 %v197, %v198
        %v200 = vsel %vm192, %v189, -inf
        %v201 = vrot.slane %v200, 4
        %v202 = vmax.f32 %v200, %v201
        %v203 = vrot.slane %v202, 2
        %v204 = vmax.f32 %v202, %v203
        %v205 = vrot.slane %v204, 1
        %v206 = vmax.f32 %v204, %v205
        %v207 = vsel %vm192, %v190, -inf
        %v208 = vrot.slane %v207, 4
        %v209 = vmax.f32 %v207, %v208
        %v210 = vrot.slane %v209, 2
        %v211 = vmax.f32 %v209, %v210
        %v212 = vrot.slane %v211, 1
        %v213 = vmax.f32 %v211, %v212
        %v214 = vsel %vm192, %v191, -inf
        %v215 = vrot.slane %v214, 4
        %v216 = vmax.f32 %v214, %v215
        %v217 = vrot.slane %v216, 2
        %v218 = vmax.f32 %v216, %v217
        %v219 = vrot.slane %v218, 1
        %v220 = vmax.f32 %v218, %v219
        %v221 = vld [vmem:[%s146 + $0x4] sm:$0xf]
        %v222 = vld [vmem:[%s146 + $0x14] sm:$0xf]
        %v223 = vld [vmem:[%s146 + $0x24] sm:$0xf]
        %v224 = vld [vmem:[%s146 + $0x34] sm:$0xf]
        %v225 = vsel %vm192, %v221, -inf
        %v226 = vrot.slane %v225, 4
        %v227 = vmax.f32 %v225, %v226
        %v228 = vrot.slane %v227, 2
        %v229 = vmax.f32 %v227, %v228
        %v230 = vrot.slane %v229, 1
        %v231 = vmax.f32 %v229, %v230
        %v232 = vsel %vm192, %v222, -inf
        %v233 = vrot.slane %v232, 4
        %v234 = vmax.f32 %v232, %v233
        %v235 = vrot.slane %v234, 2
        %v236 = vmax.f32 %v234, %v235
        %v237 = vrot.slane %v236, 1
        %v238 = vmax.f32 %v236, %v237
        %v239 = vsel %vm192, %v223, -inf
        %v240 = vrot.slane %v239, 4
        %v241 = vmax.f32 %v239, %v240
        %v242 = vrot.slane %v241, 2
        %v243 = vmax.f32 %v241, %v242
        %v244 = vrot.slane %v243, 1
        %v245 = vmax.f32 %v243, %v244
        %v246 = vsel %vm192, %v224, -inf
        %v247 = vrot.slane %v246, 4
        %v248 = vmax.f32 %v246, %v247
        %v249 = vrot.slane %v248, 2
        %v250 = vmax.f32 %v248, %v249
        %v251 = vrot.slane %v250, 1
        %v252 = vmax.f32 %v250, %v251
        %v253 = vld [vmem:[%s146 + $0x8] sm:$0xf]
        %v254 = vld [vmem:[%s146 + $0x18] sm:$0xf]
        %v255 = vld [vmem:[%s146 + $0x28] sm:$0xf]
        %v256 = vld [vmem:[%s146 + $0x38] sm:$0xf]
        %v257 = vsel %vm192, %v253, -inf
        %v258 = vrot.slane %v257, 4
        %v259 = vmax.f32 %v257, %v258
        %v260 = vrot.slane %v259, 2
        %v261 = vmax.f32 %v259, %v260
        %v262 = vrot.slane %v261, 1
        %v263 = vmax.f32 %v261, %v262
        %v264 = vsel %vm192, %v254, -inf
        %v265 = vrot.slane %v264, 4
        %v266 = vmax.f32 %v264, %v265
        %v267 = vrot.slane %v266, 2
        %v268 = vmax.f32 %v266, %v267
        %v269 = vrot.slane %v268, 1
        %v270 = vmax.f32 %v268, %v269
        %v271 = vsel %vm192, %v255, -inf
        %v272 = vrot.slane %v271, 4
        %v273 = vmax.f32 %v271, %v272
        %v274 = vrot.slane %v273, 2
        %v275 = vmax.f32 %v273, %v274
        %v276 = vrot.slane %v275, 1
        %v277 = vmax.f32 %v275, %v276
        %v278 = vsel %vm192, %v256, -inf
        %v279 = vrot.slane %v278, 4
        %v280 = vmax.f32 %v278, %v279
        %v281 = vrot.slane %v280, 2
        %v282 = vmax.f32 %v280, %v281
        %v283 = vrot.slane %v282, 1
        %v284 = vmax.f32 %v282, %v283
        %v285 = vld [vmem:[%s146 + $0xc] sm:$0xf]
        %v286 = vld [vmem:[%s146 + $0x1c] sm:$0xf]
        %v287 = vld [vmem:[%s146 + $0x2c] sm:$0xf]
        %v288 = vld [vmem:[%s146 + $0x3c] sm:$0xf]
        %v289 = vsel %vm192, %v285, -inf
        %v290 = vrot.slane %v289, 4
        %v291 = vmax.f32 %v289, %v290
        %v292 = vrot.slane %v291, 2
        %v293 = vmax.f32 %v291, %v292
        %v294 = vrot.slane %v293, 1
        %v295 = vmax.f32 %v293, %v294
        %v296 = vsel %vm192, %v286, -inf
        %v297 = vrot.slane %v296, 4
        %v298 = vmax.f32 %v296, %v297
        %v299 = vrot.slane %v298, 2
        %v300 = vmax.f32 %v298, %v299
        %v301 = vrot.slane %v300, 1
        %v302 = vmax.f32 %v300, %v301
        %v303 = vsel %vm192, %v287, -inf
        %v304 = vrot.slane %v303, 4
        %v305 = vmax.f32 %v303, %v304
        %v306 = vrot.slane %v305, 2
        %v307 = vmax.f32 %v305, %v306
        %v308 = vrot.slane %v307, 1
        %v309 = vmax.f32 %v307, %v308
        %v310 = vsel %vm192, %v288, -inf
        %v311 = vrot.slane %v310, 4
        %v312 = vmax.f32 %v310, %v311
        %v313 = vrot.slane %v312, 2
        %v314 = vmax.f32 %v312, %v313
        %v315 = vrot.slane %v314, 1
        %v316 = vmax.f32 %v314, %v315
        %vm317 = vcmask 1040384
        %v318 = vsel %vm317, %v199, %v231
        %v319 = vsel %vm317, %v206, %v238
        %v320 = vsel %vm317, %v213, %v245
        %v321 = vsel %vm317, %v220, %v252
        %vm322 = vcmask 1041408
        %v323 = vsel %vm322, %v318, %v263
        %v324 = vsel %vm322, %v319, %v270
        %v325 = vsel %vm322, %v320, %v277
        %v326 = vsel %vm322, %v321, %v284
        %vm327 = vcmask 1042432
        %v328 = vsel %vm327, %v323, %v295
        %v329 = vsel %vm327, %v324, %v302
        %v330 = vsel %vm327, %v325, %v309
        %v331 = vsel %vm327, %v326, %v316
        %vm332 = vcmask 27648
        %v333 = vsel %vm332, %v328, -inf
        %334 = vmax.xlane.f32.xlu0 %v333
        %v335 = vpop.xlane.xlu0 %334
        %v336 = vsel %vm332, %v329, -inf
        %337 = vmax.xlane.f32.xlu0 %v336
        %v338 = vpop.xlane.xlu0 %337
        %v339 = vsel %vm332, %v330, -inf
        %340 = vmax.xlane.f32.xlu0 %v339
        %v341 = vpop.xlane.xlu0 %340
        %v342 = vsel %vm332, %v331, -inf
        %343 = vmax.xlane.f32.xlu0 %v342
        %v344 = vpop.xlane.xlu0 %343
        %vm345 = vcmask 60448
        %v346 = vsel %vm345, %v328, -inf
        %347 = vmax.xlane.f32.xlu0 %v346
        %v348 = vpop.xlane.xlu0 %347
        %v349 = vsel %vm345, %v329, -inf
        %350 = vmax.xlane.f32.xlu0 %v349
        %v351 = vpop.xlane.xlu0 %350
        %v352 = vsel %vm345, %v330, -inf
        %353 = vmax.xlane.f32.xlu0 %v352
        %v354 = vpop.xlane.xlu0 %353
        %v355 = vsel %vm345, %v331, -inf
        %356 = vmax.xlane.f32.xlu0 %v355
        %v357 = vpop.xlane.xlu0 %356
        %vm358 = vcmask 93248
        %v359 = vsel %vm358, %v328, -inf
        %360 = vmax.xlane.f32.xlu0 %v359
        %v361 = vpop.xlane.xlu0 %360
        %v362 = vsel %vm358, %v329, -inf
        %363 = vmax.xlane.f32.xlu0 %v362
        %v364 = vpop.xlane.xlu0 %363
        %v365 = vsel %vm358, %v330, -inf
        %366 = vmax.xlane.f32.xlu0 %v365
        %v367 = vpop.xlane.xlu0 %366
        %v368 = vsel %vm358, %v331, -inf
        %369 = vmax.xlane.f32.xlu0 %v368
        %v370 = vpop.xlane.xlu0 %369
        %vm371 = vcmask 126048
        %v372 = vsel %vm371, %v328, -inf
        %373 = vmax.xlane.f32.xlu0 %v372
        %v374 = vpop.xlane.xlu0 %373
        %v375 = vsel %vm371, %v329, -inf
        %376 = vmax.xlane.f32.xlu0 %v375
        %v377 = vpop.xlane.xlu0 %376
        %v378 = vsel %vm371, %v330, -inf
        %379 = vmax.xlane.f32.xlu0 %v378
        %v380 = vpop.xlane.xlu0 %379
        %v381 = vsel %vm371, %v331, -inf
        %382 = vmax.xlane.f32.xlu0 %v381
        %v383 = vpop.xlane.xlu0 %382
        %vm384 = vcmask 7168
        %v385 = vsel %vm384, %v335, %v348
        %v386 = vsel %vm384, %v338, %v351
        %v387 = vsel %vm384, %v341, %v354
        %v388 = vsel %vm384, %v344, %v357
        %vm389 = vcmask 15360
        %v390 = vsel %vm389, %v385, %v361
        %v391 = vsel %vm389, %v386, %v364
        %v392 = vsel %vm389, %v387, %v367
        %v393 = vsel %vm389, %v388, %v370
        %vm394 = vcmask 23552
        %v395 = vsel %vm394, %v390, %v374
        %v396 = vsel %vm394, %v391, %v377
        %v397 = vsel %vm394, %v392, %v380
        %v398 = vsel %vm394, %v393, %v383
        %v399 = vrot.slane %v397, 4
        %vm400 = vcmask 1047556
        %v401 = vsel %vm400, %v399, %v395
        %v403 = vunpack.c.l.s4 1983009808
        %v404 = vunpack.c.0.s8 %v403
        %v405 = vperm.slane %v401, %v404
        %v406 = vrot.slane %v398, 4
        %v407 = vsel %vm400, %v406, %v396
        %v409 = vunpack.c.l.s4 1983009808
        %v410 = vunpack.c.0.s8 %v409
        %v411 = vperm.slane %v407, %v410
        %v412 = vrot.slane %v411, 4
        %v413 = vsel %vm400, %v412, %v405
        %v414 = vrot.slane %v405, 4
        %v415 = vsel %vm400, %v411, %v414
        %v417 = vunpack.c.l.s4 1934713408
        %v418 = vunpack.c.0.s8 %v417
        %v419 = vperm.slane %v413, %v418
        %v421 = vunpack.c.l.s4 1934713408
        %v422 = vunpack.c.0.s8 %v421
        %v423 = vperm.slane %v415, %v422
        %v424 = vrot.slane %v419, 4
        %v425 = vsel %vm400, 0.0, %v424
        %v426 = vrot.slane %v423, 4
        %v427 = vsel %vm400, 0.0, %v426
        %429 = vrot.lane.b32.xlu0 %v425, 4
        %v430 = vpop.permute.xlu0 %429
        %433 = vrot.lane.b32.xlu0 %v423, 8
        %v434 = vpop.permute.xlu0 %433
        %437 = vrot.lane.b32.xlu0 %v427, 12
        %v438 = vpop.permute.xlu0 %437
        %vm440 = vcmask 31744
        %v441 = vsel %vm440, %v419, %v430
        %vm442 = vcmask 64512
        %v443 = vsel %vm442, %v441, %v434
        %vm444 = vcmask 97280
        %v445 = vsel %vm444, %v443, %v438
        %446 = vxpose.xlu0.b32.start [1/16] %v445, 128
        %447 = vxpose.xlu0.b32.cont [2/16] 0.0, 128
        %448 = vxpose.xlu0.b32.cont [3/16] 0.0, 128
        %449 = vxpose.xlu0.b32.cont [4/16] 0.0, 128
        %450 = vxpose.xlu0.b32.cont [5/16] 0.0, 128
        %451 = vxpose.xlu0.b32.cont [6/16] 0.0, 128
        %452 = vxpose.xlu0.b32.cont [7/16] 0.0, 128
        %453 = vxpose.xlu0.b32.cont [8/16] 0.0, 128
        %454 = vxpose.xlu0.b32.cont [9/16] 0.0, 128
        %455 = vxpose.xlu0.b32.cont [10/16] 0.0, 128
        %456 = vxpose.xlu0.b32.cont [11/16] 0.0, 128
        %457 = vxpose.xlu0.b32.cont [12/16] 0.0, 128
        %458 = vxpose.xlu0.b32.cont [13/16] 0.0, 128
        %459 = vxpose.xlu0.b32.cont [14/16] 0.0, 128
        %460 = vxpose.xlu0.b32.cont [15/16] 0.0, 128
        %461 = vxpose.xlu0.b32.end [16/16] 0.0, 128
        %v462 = vpop.trf.xlu0
        %v463 = vpop.trf.xlu0
        %v464 = vpop.trf.xlu0
        %v465 = vpop.trf.xlu0
        %v466 = vpop.trf.xlu0
        %v467 = vpop.trf.xlu0
        %v468 = vpop.trf.xlu0
        %v469 = vpop.trf.xlu0
        %v470 = vpop.trf.xlu0
        %v471 = vpop.trf.xlu0
        %v472 = vpop.trf.xlu0
        %v473 = vpop.trf.xlu0
        %v474 = vpop.trf.xlu0
        %v475 = vpop.trf.xlu0
        %v476 = vpop.trf.xlu0
        %v477 = vpop.trf.xlu0
        %478 = vst.msk [vmem:[%s186] sm:$0xff] %vm440, %v462
        %479 = vst.msk [vmem:[%s186 + $0x8] sm:$0xff] %vm440, %v463
        %s480 = smul.u32 2, %s22
        %p481 = scmp.lt.s32.totalorder %s20, 1
        %s482 = scalar_select %p481, %s20, 1
        %p483 = scmp.lt.s32.totalorder %s480, 1
        %s484 = scalar_select %p483, %s480, 1
        %p485 = scmp.lt.s32.totalorder %s21, 0
        %s486 = scalar_select %p485, %s21, 0
        %s487 = sadd.s32 %s486, %s484
        %s488 = smul.addr %s482, 2
        %s489 = sadd.s32 %s487, %s488
        %s490 = smul.addr %s489, 8
        %s491 = scalar_lea.vmem %s1, %s490
        // Predicated region
        $region29: #{tpu_custom_call.1} parent=23 // pred_check
          %p492 = pneg %p86
        $region30: #{tpu_custom_call.1} parent=23 // pred_check_branch
          %494 = sbr.rel (%p492) target = $region32
        $region31: #{tpu_custom_call.1} parent=23 // pred_region
          %s495 = smul.u32 2, %s22
        $region32: #{tpu_custom_call.1} parent=23 // pred_fallthru
          _
      $region24: #{tpu_custom_call.1} parent=5 // pred_fallthru
        _
      %p496 = scmp.le.s32.totalorder 2, %s10
      // Predicated region
      $region33: #{tpu_custom_call.1} parent=5 // pred_check
        %p497 = pneg %p496
      $region34: #{tpu_custom_call.1} parent=5 // pred_check_branch
        %499 = sbr.rel (%p497) target = $region36
      $region35: #{tpu_custom_call.1} parent=5 // pred_region
        %s500 = ssub.s32 %s10, 2
        // Predicated region
        $region37: #{tpu_custom_call.1} parent=35 // pred_check
          %p501 = pneg %p92
        $region38: #{tpu_custom_call.1} parent=35 // pred_check_branch
          %503 = sbr.rel (%p501) target = $region40
        $region39: #{tpu_custom_call.1} parent=35 // pred_region
          %s504 = smul.u32 2, %s25
          %p505 = scmp.lt.s32.totalorder %s23, 1
          %s506 = scalar_select %p505, %s23, 1
          %p507 = scmp.lt.s32.totalorder %s504, 1
          %s508 = scalar_select %p507, %s504, 1
          %p509 = scmp.lt.s32.totalorder %s24, 0
          %s510 = scalar_select %p509, %s24, 0
          %s511 = sadd.s32 %s510, %s508
          %s512 = smul.addr %s506, 2
          %s513 = sadd.s32 %s511, %s512
          %s514 = smul.addr %s513, 8
          %s515 = scalar_lea.vmem %s1, %s514
        $region40: #{tpu_custom_call.1} parent=35 // pred_fallthru
          _
      $region36: #{tpu_custom_call.1} parent=5 // pred_fallthru
        _
    $region6: #{tpu_custom_call.1} parent=1 // loop_footer
      %s14 = sadd.s32 1, %s10
    $region7: #{tpu_custom_call.1} parent=1 // loop_footer_branch
      %9 = sbr.rel target = $region3
    $region8: #{tpu_custom_call.1} parent=1 // loop_exit
      _
    %516 = vsyncpa [#allocation3], 1
    %s517 = scalar_lea.sflag [#allocation3], 1
    %518 = vsyncpa %s517, 1

</llo_original>
